<compile_context>
chip_gen: v6e
topology: v6e:2x2x1
jax: 0.10.0
libtpu: 0.0.40
codegen_flags: <defaults>
</compile_context>

<pallas_src>
import functools

import jax
import jax.numpy as jnp
from jax.experimental import pallas as pl
from jax.experimental.pallas import tpu as pltpu


def _round_up(x, m):
    return ((x + m - 1) // m) * m


def gru_cell_kernel(x_ref, hx_ref, wx_ref, whru_ref, whn_ref, bx_ref, bhn_ref,
                    o_ref):
    Hp = hx_ref.shape[-1]

    hx_f32 = hx_ref[...]                          # (bb, Hp) f32, used in the blend
    hx_c = hx_f32.astype(whn_ref.dtype)           # cast ONCE for both hidden matmuls

    # Input-path gates (r,u,n) + combined bias.  f32 accumulation on the MXU.
    s = jnp.dot(x_ref[...], wx_ref[...],
                preferred_element_type=jnp.float32) + bx_ref[...]      # (bb, 3Hp)
    # Hidden-path r,u gates only (no duplicated Whn*hx).
    sh = jnp.dot(hx_c, whru_ref[...],
                 preferred_element_type=jnp.float32)                   # (bb, 2Hp)
    # Candidate-hidden term, kept separate because it is gated by r.
    nh = jnp.dot(hx_c, whn_ref[...],
                 preferred_element_type=jnp.float32) + bhn_ref[...]    # (bb, Hp)

    # Gate math entirely in f32 (EUP sigmoid/tanh, VPU blend).  Hp is a multiple of
    # 128, so every slice below is lane-tile aligned (no XLU shuffles) and the
    # output store is lane-dense.
    r = jax.nn.sigmoid(s[:, 0:Hp] + sh[:, 0:Hp])
    u = jax.nn.sigmoid(s[:, Hp:2 * Hp] + sh[:, Hp:2 * Hp])
    n = jnp.tanh(s[:, 2 * Hp:3 * Hp] + r * nh)

    # hy = u*hx + (1-u)*n  ==  n + u*(hx - n)   (one fewer mul, no (1-u) broadcast)
    o_ref[...] = (n + u * (hx_f32 - n)).astype(o_ref.dtype)


def prepare_gru_params(weight_ih, weight_hh, bias_ih, bias_hh,
                       compute_dtype=jnp.bfloat16):
    """One-time parameter prep: transpose, per-gate 128-lane padding, bias combine,
    MXU-dtype cast.  Hoisted out of the step so no per-call weight work remains.

    weight_ih: (3H, I); weight_hh: (3H, H); bias_ih, bias_hh: (3H,).
    Gate order (PyTorch GRU): [reset, update, new].
    """
    H = weight_hh.shape[1]
    I = weight_ih.shape[1]
    Hp = _round_up(H, 128)
    Ip = _round_up(I, 128)

    def pad2(a, rows, cols):
        return jnp.pad(a, ((0, rows - a.shape[0]), (0, cols - a.shape[1])))

    def pad1(v, n):
        return jnp.pad(v, (0, n - v.shape[0]))

    wih_t = weight_ih.T                                   # (I, 3H)
    whh_t = weight_hh.T                                   # (H, 3H)

    # Input weights, per-gate padded to Hp columns -> (Ip, 3*Hp).
    wx = jnp.concatenate(
        [pad2(wih_t[:, 0:H], Ip, Hp),
         pad2(wih_t[:, H:2 * H], Ip, Hp),
         pad2(wih_t[:, 2 * H:3 * H], Ip, Hp)], axis=1).astype(compute_dtype)
    # Hidden weights for r,u only -> (Hp, 2*Hp).
    whru = jnp.concatenate(
        [pad2(whh_t[:, 0:H], Hp, Hp),
         pad2(whh_t[:, H:2 * H], Hp, Hp)], axis=1).astype(compute_dtype)
    # Hidden weight for the candidate gate -> (Hp, Hp).
    whn = pad2(whh_t[:, 2 * H:3 * H], Hp, Hp).astype(compute_dtype)

    # Biases (f32).  r/u: b_ih+b_hh combined; n: only b_ih here (b_hh_n rides on nh).
    b_r = pad1(bias_ih[0:H] + bias_hh[0:H], Hp)
    b_u = pad1(bias_ih[H:2 * H] + bias_hh[H:2 * H], Hp)
    b_in = pad1(bias_ih[2 * H:3 * H], Hp)
    bx = jnp.concatenate([b_r, b_u, b_in]).reshape(1, 3 * Hp).astype(jnp.float32)
    bhn = pad1(bias_hh[2 * H:3 * H], Hp).reshape(1, Hp).astype(jnp.float32)

    return {"wx": wx, "whru": whru, "whn": whn, "bx": bx, "bhn": bhn}


@jax.jit
def gru_cell_forward(x, state, params):
    """x: (B, I); state: (1, B, H); params from prepare_gru_params.
    Returns hy: (1, B, H) in x.dtype."""
    B, I = x.shape
    hx = state[0]                                  # (B, H)
    H = hx.shape[-1]

    wx, whru, whn = params["wx"], params["whru"], params["whn"]
    bx, bhn = params["bx"], params["bhn"]
    Ip, three_hp = wx.shape
    Hp = three_hp // 3
    cdt = wx.dtype                                 # MXU operand dtype

    # Batch tiling: pad to the sublane tile, <=256 rows per block ("parallel" axis).
    if B <= 256:
        block_b = _round_up(B, 8)
        B_pad = block_b
    else:
        block_b = 256
        B_pad = _round_up(B, 256)
    nb = B_pad // block_b

    # Pad activations to the tiled layout (no-op when already aligned).  x goes to
    # the MXU dtype; hx stays f32 (needed for the blend; cast to bf16 in-kernel).
    x_p = jnp.pad(x, ((0, B_pad - B), (0, Ip - I))).astype(cdt)
    hx_p = jnp.pad(hx, ((0, B_pad - B), (0, Hp - H))).astype(jnp.float32)

    itemsz = lambda a: a.dtype.itemsize
    weight_bytes = ((wx.size + whru.size + whn.size) * itemsz(wx)
                    + (bx.size + bhn.size) * 4)
    act_bytes = block_b * (Ip * itemsz(x_p) + Hp * 4 + Hp * itemsz(x))
    # Double-buffered weights + activations, plus headroom for f32 intermediates.
    # Capped at 64 MiB so the same limit is valid on v7x (64 MiB physical VMEM).
    vmem_bytes = int(min(64 * 1024 * 1024,
                         max(32 * 1024 * 1024,
                             2 * weight_bytes + 4 * act_bytes + (4 << 20))))

    cost = pl.CostEstimate(
        flops=2 * B_pad * (Ip * 3 * Hp + Hp * 2 * Hp + Hp * Hp),
        transcendentals=B_pad * 3 * Hp,
        bytes_accessed=int(weight_bytes + x_p.size * itemsz(x_p)
                           + hx_p.size * 4 + B_pad * Hp * itemsz(x)),
    )

    hy_p = pl.pallas_call(
        gru_cell_kernel,
        out_shape=jax.ShapeDtypeStruct((B_pad, Hp), x.dtype),
        grid_spec=pltpu.PrefetchScalarGridSpec(
            num_scalar_prefetch=0,
            grid=(nb,),
            in_specs=[
                pl.BlockSpec((block_b, Ip), lambda i: (i, 0)),      # x tile
                pl.BlockSpec((block_b, Hp), lambda i: (i, 0)),      # hx tile (f32)
                pl.BlockSpec((Ip, 3 * Hp), lambda i: (0, 0)),       # wx   (resident)
                pl.BlockSpec((Hp, 2 * Hp), lambda i: (0, 0)),       # whru (resident)
                pl.BlockSpec((Hp, Hp), lambda i: (0, 0)),           # whn  (resident)
                pl.BlockSpec((1, 3 * Hp), lambda i: (0, 0)),        # bx
                pl.BlockSpec((1, Hp), lambda i: (0, 0)),            # bhn
            ],
            out_specs=pl.BlockSpec((block_b, Hp), lambda i: (i, 0)),
        ),
        compiler_params=pltpu.CompilerParams(
            dimension_semantics=("parallel",),    # batch tiles split across TCs (v7x)
            vmem_limit_bytes=vmem_bytes,
        ),
        cost_estimate=cost,
    )(x_p, hx_p, wx, whru, whn, bx, bhn)

    return hy_p[:B, :H][None, ...]                # (1, B, H)


def gru_cell_reference(x, state, weight_ih, weight_hh, bias_ih, bias_hh):
    """Pure-JAX f32 reference mirroring the PyTorch forward, for verification."""
    hx = state[0]
    gates_i = x @ weight_ih.T + bias_ih
    gates_h = hx @ weight_hh.T + bias_hh
    H = hx.shape[-1]
    ri, ui, ni = gates_i[:, :H], gates_i[:, H:2 * H], gates_i[:, 2 * H:]
    rh, uh, nh = gates_h[:, :H], gates_h[:, H:2 * H], gates_h[:, 2 * H:]
    r = jax.nn.sigmoid(ri + rh)
    u = jax.nn.sigmoid(ui + uh)
    n = jnp.tanh(ni + r * nh)
    hy = u * hx + (1.0 - u) * n
    return hy[None, ...]


if __name__ == "__main__":
    key = jax.random.PRNGKey(0)
    B, I, H = 2, 16, 32

    k = jax.random.split(key, 6)
    # Deterministic parameter init (module uses torch.randn -> standard normal).
    weight_ih = jax.random.normal(k[0], (3 * H, I), dtype=jnp.float32)
    weight_hh = jax.random.normal(k[1], (3 * H, H), dtype=jnp.float32)
    bias_ih = jax.random.normal(k[2], (3 * H,), dtype=jnp.float32)
    bias_hh = jax.random.normal(k[3], (3 * H,), dtype=jnp.float32)

    x = jax.random.normal(k[4], (B, I), dtype=jnp.float32)
    state = jax.random.normal(k[5], (1, B, H), dtype=jnp.float32)

    hy_ref = gru_cell_reference(x, state, weight_ih, weight_hh, bias_ih, bias_hh)

    # 1) f32 MXU operands: validates the padded/fused kernel algebra tightly.
    params_f32 = prepare_gru_params(weight_ih, weight_hh, bias_ih, bias_hh,
                                    compute_dtype=jnp.float32)
    hy_f32 = jax.block_until_ready(gru_cell_forward(x, state, params_f32))
    assert hy_f32.shape == (1, B, H)
    assert jnp.allclose(hy_f32, hy_ref, atol=1e-4, rtol=1e-4), "f32 mismatch vs reference"

    # 2) bf16 MXU operands (recommended default); gate math stays f32, and the
    #    restructured candidate (tanh(s_n + r*nh), no duplicated Whn*hx) keeps the
    #    bf16 error to per-matmul rounding only.
    params_bf16 = prepare_gru_params(weight_ih, weight_hh, bias_ih, bias_hh,
                                     compute_dtype=jnp.bfloat16)
    hy_bf16 = jax.block_until_ready(gru_cell_forward(x, state, params_bf16))
    assert hy_bf16.shape == (1, B, H)
    assert jnp.allclose(hy_bf16, hy_ref, atol=1e-1, rtol=1e-1), "bf16 mismatch vs reference"

    print("KERNEL_OK")
</pallas_src>

<mosaic_0001>
module attributes {stable_mosaic.version = 11 : i64} {
  func.func @gru_cell_kernel(%arg0: i32, %arg1: memref<8x128xf32, #tpu.memory_space<vmem>>, %arg2: memref<8x128xf32, #tpu.memory_space<vmem>>, %arg3: memref<128x384xf32, #tpu.memory_space<vmem>>, %arg4: memref<128x256xf32, #tpu.memory_space<vmem>>, %arg5: memref<128x128xf32, #tpu.memory_space<vmem>>, %arg6: memref<1x384xf32, #tpu.memory_space<vmem>>, %arg7: memref<1x128xf32, #tpu.memory_space<vmem>>, %arg8: memref<8x128xf32, #tpu.memory_space<vmem>>) attributes {dimension_semantics = [#tpu.dimension_semantics<parallel>], iteration_bounds = array<i64: 1>, scalar_prefetch = 0 : i64, scratch_operands = 0 : i64, tpu.core_type = #tpu.core_type<tc>, window_params = [{transform_indices = @transform_0, window_bounds = array<i64: 8, 128>}, {transform_indices = @transform_1, window_bounds = array<i64: 8, 128>}, {pipeline_mode = #tpu.pipeline_mode<synchronous>, transform_indices = @transform_2, window_bounds = array<i64: 128, 384>}, {pipeline_mode = #tpu.pipeline_mode<synchronous>, transform_indices = @transform_3, window_bounds = array<i64: 128, 256>}, {pipeline_mode = #tpu.pipeline_mode<synchronous>, transform_indices = @transform_4, window_bounds = array<i64: 128, 128>}, {pipeline_mode = #tpu.pipeline_mode<synchronous>, transform_indices = @transform_5, window_bounds = array<i64: 1, 384>}, {pipeline_mode = #tpu.pipeline_mode<synchronous>, transform_indices = @transform_6, window_bounds = array<i64: 1, 128>}, {transform_indices = @transform_7, window_bounds = array<i64: 8, 128>}]} {
    %c0 = arith.constant 0 : index
    %c0_0 = arith.constant 0 : index
    %0 = vector.load %arg2[%c0, %c0_0] : memref<8x128xf32, #tpu.memory_space<vmem>>, vector<8x128xf32>
    %c0_1 = arith.constant 0 : index
    %c0_2 = arith.constant 0 : index
    %1 = vector.load %arg1[%c0_1, %c0_2] : memref<8x128xf32, #tpu.memory_space<vmem>>, vector<8x128xf32>
    %c0_3 = arith.constant 0 : index
    %c0_4 = arith.constant 0 : index
    %2 = vector.load %arg3[%c0_3, %c0_4] : memref<128x384xf32, #tpu.memory_space<vmem>>, vector<128x384xf32>
    %cst = arith.constant dense<0.000000e+00> : vector<8x384xf32>
    %3 = tpu.matmul %1, %2, %cst {dimension_numbers = #tpu.dot_dimension_numbers<[1], [0], [0], [1], [0, 0, 1, 1], [], []>} : vector<8x128xf32>, vector<128x384xf32>, vector<8x384xf32> -> vector<8x384xf32>
    %c0_5 = arith.constant 0 : index
    %c0_6 = arith.constant 0 : index
    %4 = vector.load %arg6[%c0_5, %c0_6] : memref<1x384xf32, #tpu.memory_space<vmem>>, vector<1x384xf32>
    %5 = vector.broadcast %4 : vector<1x384xf32> to vector<8x384xf32>
    %6 = arith.addf %3, %5 : vector<8x384xf32>
    %c0_7 = arith.constant 0 : index
    %c0_8 = arith.constant 0 : index
    %7 = vector.load %arg4[%c0_7, %c0_8] : memref<128x256xf32, #tpu.memory_space<vmem>>, vector<128x256xf32>
    %cst_9 = arith.constant dense<0.000000e+00> : vector<8x256xf32>
    %8 = tpu.matmul %0, %7, %cst_9 {dimension_numbers = #tpu.dot_dimension_numbers<[1], [0], [0], [1], [0, 0, 1, 1], [], []>} : vector<8x128xf32>, vector<128x256xf32>, vector<8x256xf32> -> vector<8x256xf32>
    %c0_10 = arith.constant 0 : index
    %c0_11 = arith.constant 0 : index
    %9 = vector.load %arg5[%c0_10, %c0_11] : memref<128x128xf32, #tpu.memory_space<vmem>>, vector<128x128xf32>
    %cst_12 = arith.constant dense<0.000000e+00> : vector<8x128xf32>
    %10 = tpu.matmul %0, %9, %cst_12 {dimension_numbers = #tpu.dot_dimension_numbers<[1], [0], [0], [1], [0, 0, 1, 1], [], []>} : vector<8x128xf32>, vector<128x128xf32>, vector<8x128xf32> -> vector<8x128xf32>
    %c0_13 = arith.constant 0 : index
    %c0_14 = arith.constant 0 : index
    %11 = vector.load %arg7[%c0_13, %c0_14] : memref<1x128xf32, #tpu.memory_space<vmem>>, vector<1x128xf32>
    %12 = vector.broadcast %11 : vector<1x128xf32> to vector<8x128xf32>
    %13 = arith.addf %10, %12 : vector<8x128xf32>
    %14 = vector.extract_strided_slice %6 {offsets = [0, 0], sizes = [8, 128], strides = [1, 1]} : vector<8x384xf32> to vector<8x128xf32>
    %15 = vector.extract_strided_slice %8 {offsets = [0, 0], sizes = [8, 128], strides = [1, 1]} : vector<8x256xf32> to vector<8x128xf32>
    %16 = arith.addf %14, %15 : vector<8x128xf32>
    %17 = arith.negf %16 : vector<8x128xf32>
    %18 = math.exp %17 : vector<8x128xf32>
    %cst_15 = arith.constant 1.000000e+00 : f32
    %19 = vector.broadcast %cst_15 : f32 to vector<8x128xf32>
    %20 = arith.addf %19, %18 : vector<8x128xf32>
    %21 = arith.divf %19, %20 : vector<8x128xf32>
    %22 = vector.extract_strided_slice %6 {offsets = [0, 128], sizes = [8, 128], strides = [1, 1]} : vector<8x384xf32> to vector<8x128xf32>
    %23 = vector.extract_strided_slice %8 {offsets = [0, 128], sizes = [8, 128], strides = [1, 1]} : vector<8x256xf32> to vector<8x128xf32>
    %24 = arith.addf %22, %23 : vector<8x128xf32>
    %25 = arith.negf %24 : vector<8x128xf32>
    %26 = math.exp %25 : vector<8x128xf32>
    %cst_16 = arith.constant 1.000000e+00 : f32
    %27 = vector.broadcast %cst_16 : f32 to vector<8x128xf32>
    %28 = arith.addf %27, %26 : vector<8x128xf32>
    %29 = arith.divf %27, %28 : vector<8x128xf32>
    %30 = vector.extract_strided_slice %6 {offsets = [0, 256], sizes = [8, 128], strides = [1, 1]} : vector<8x384xf32> to vector<8x128xf32>
    %31 = arith.mulf %21, %13 : vector<8x128xf32>
    %32 = arith.addf %30, %31 : vector<8x128xf32>
    %33 = math.tanh %32 : vector<8x128xf32>
    %34 = arith.subf %0, %33 : vector<8x128xf32>
    %35 = arith.mulf %29, %34 : vector<8x128xf32>
    %36 = arith.addf %33, %35 : vector<8x128xf32>
    %c0_17 = arith.constant 0 : index
    %c0_18 = arith.constant 0 : index
    %37 = vector.load %arg8[%c0_17, %c0_18] : memref<8x128xf32, #tpu.memory_space<vmem>>, vector<8x128xf32>
    tpu.vector_store %arg8[%c0_17, %c0_18], %36 {strides = array<i32>} : memref<8x128xf32, #tpu.memory_space<vmem>>, vector<8x128xf32>,
    return
  }
  func.func @transform_0(%arg0: i32) -> (i32, i32) {
    %c0_i32 = arith.constant 0 : i32
    %c0_i32_0 = arith.constant 0 : i32
    return %arg0, %c0_i32 : i32, i32
  }
  func.func @transform_1(%arg0: i32) -> (i32, i32) {
    %c0_i32 = arith.constant 0 : i32
    %c0_i32_0 = arith.constant 0 : i32
    return %arg0, %c0_i32 : i32, i32
  }
  func.func @transform_2(%arg0: i32) -> (i32, i32) {
    %c0_i32 = arith.constant 0 : i32
    %c0_i32_0 = arith.constant 0 : i32
    %c0_i32_1 = arith.constant 0 : i32
    return %c0_i32, %c0_i32_0 : i32, i32
  }
  func.func @transform_3(%arg0: i32) -> (i32, i32) {
    %c0_i32 = arith.constant 0 : i32
    %c0_i32_0 = arith.constant 0 : i32
    %c0_i32_1 = arith.constant 0 : i32
    return %c0_i32, %c0_i32_0 : i32, i32
  }
  func.func @transform_4(%arg0: i32) -> (i32, i32) {
    %c0_i32 = arith.constant 0 : i32
    %c0_i32_0 = arith.constant 0 : i32
    %c0_i32_1 = arith.constant 0 : i32
    return %c0_i32, %c0_i32_0 : i32, i32
  }
  func.func @transform_5(%arg0: i32) -> (i32, i32) {
    %c0_i32 = arith.constant 0 : i32
    %c0_i32_0 = arith.constant 0 : i32
    %c0_i32_1 = arith.constant 0 : i32
    return %c0_i32, %c0_i32_0 : i32, i32
  }
  func.func @transform_6(%arg0: i32) -> (i32, i32) {
    %c0_i32 = arith.constant 0 : i32
    %c0_i32_0 = arith.constant 0 : i32
    %c0_i32_1 = arith.constant 0 : i32
    return %c0_i32, %c0_i32_0 : i32, i32
  }
  func.func @transform_7(%arg0: i32) -> (i32, i32) {
    %c0_i32 = arith.constant 0 : i32
    %c0_i32_0 = arith.constant 0 : i32
    return %arg0, %c0_i32 : i32, i32
  }
}

</mosaic_0001>

<llo_original>
// kernel: gru_cell_forward.1
$region0: #{gru_cell_forward.1}
  #allocation0 [shape = 'u32[]', space=smem, size = 0x4, offset = 0x4, fixed_abs, tag = 'smem constant byte address 0x4 - core index']
  #allocation1 [shape = 'u32[144,128]{1,0:T(1,128)}', space=vmem, size = 0x12000, scoped, tag = 'internal scratch']
  %s0 = inlined_call_operand.vmem [shape: f32[8,128], index: 0, kind: input, shape index: {}]
  %s1 = inlined_call_operand.vmem [shape: f32[8,128], index: 1, kind: input, shape index: {}]
  %s2 = inlined_call_operand.hbm [shape: f32[128,384], index: 2, kind: input, shape index: {}]
  %s3 = inlined_call_operand.hbm [shape: f32[128,256], index: 3, kind: input, shape index: {}]
  %s4 = inlined_call_operand.hbm [shape: f32[128,128], index: 4, kind: input, shape index: {}]
  %s5 = inlined_call_operand.vmem [shape: f32[1,384], index: 5, kind: input, shape index: {}]
  %s6 = inlined_call_operand.vmem [shape: f32[1,128], index: 6, kind: input, shape index: {}]
  %s7 = inlined_call_operand.vmem [shape: f32[8,128], index: 7, kind: output, shape index: {}]
  %s8 = sld [smem:[#allocation0]]
  $region50: #{gru_cell_forward.1} parent=0
    _
  %s10 = ssub.s32 1, %s8
  %s11 = scalar_select 0, %s10, %s8
  $region1: #{gru_cell_forward.1} parent=0
    #allocation2 [shape = 'u8[196608]{0}', space=vmem, size = 0x30000, scoped, tag = 'input window, operand 2, single buffered']
    #allocation3 [shape = 's32[1]{0}', space=sflag, size = 0x4, scoped, tag = 'scoped memory for gru_cell_forward.1']
    #allocation4 [shape = 'u8[131072]{0}', space=vmem, size = 0x20000, scoped, tag = 'input window, operand 3, single buffered']
    #allocation5 [shape = 's32[1]{0}', space=sflag, size = 0x4, scoped, tag = 'scoped memory for gru_cell_forward.1']
    #allocation6 [shape = 'u8[65536]{0}', space=vmem, size = 0x10000, scoped, tag = 'input window, operand 4, single buffered']
    %12 = vsyncpa [#allocation3], 0
    %13 = vsyncpa [#allocation5], 0
    // Predicated region
    $region2: #{gru_cell_forward.1} parent=1 // pred_check
      _
    $region3: #{gru_cell_forward.1} parent=1 // pred_check_branch
      %15 = sbr.rel (0) target = $region5
    $region4: #{gru_cell_forward.1} parent=1 // pred_region
      _
    $region5: #{gru_cell_forward.1} parent=1 // pred_fallthru
      _
    // Predicated region
    $region6: #{gru_cell_forward.1} parent=1 // pred_check
      _
    $region7: #{gru_cell_forward.1} parent=1 // pred_check_branch
      %17 = sbr.rel (0) target = $region9
    $region8: #{gru_cell_forward.1} parent=1 // pred_region
      _
    $region9: #{gru_cell_forward.1} parent=1 // pred_fallthru
      _
    // Predicated region
    $region10: #{gru_cell_forward.1} parent=1 // pred_check
      _
    $region11: #{gru_cell_forward.1} parent=1 // pred_check_branch
      %19 = sbr.rel (0) target = $region13
    $region12: #{gru_cell_forward.1} parent=1 // pred_region
      %s21 = ssub.s32 6144, 6144
      %22 = vsyncadd [#allocation3], %s21
      %s23 = sshll.u32 [#allocation2], 4
      %s24 = int_to_ptr.vmem [resolvable:$true] %s23
      %29 = dma.hbm_to_vmem [thread:$0]  %s2, 6144, %s24, [#allocation3], 384, 384, 24
    $region13: #{gru_cell_forward.1} parent=1 // pred_fallthru
      _
    // Predicated region
    $region14: #{gru_cell_forward.1} parent=1 // pred_check
      _
    $region15: #{gru_cell_forward.1} parent=1 // pred_check_branch
      %31 = sbr.rel (0) target = $region17
    $region16: #{gru_cell_forward.1} parent=1 // pred_region
      %s33 = ssub.s32 4096, 4096
      %34 = vsyncadd [#allocation5], %s33
      %s35 = sshll.u32 [#allocation4], 4
      %s36 = int_to_ptr.vmem [resolvable:$true] %s35
      %41 = dma.hbm_to_vmem [thread:$0]  %s3, 4096, %s36, [#allocation5], 256, 256, 16
    $region17: #{gru_cell_forward.1} parent=1 // pred_fallthru
      _
    // Predicated region
    $region18: #{gru_cell_forward.1} parent=1 // pred_check
      _
    $region19: #{gru_cell_forward.1} parent=1 // pred_check_branch
      %43 = sbr.rel (0) target = $region21
    $region20: #{gru_cell_forward.1} parent=1 // pred_region
      %s45 = ssub.s32 2048, 2048
      %46 = vsyncadd [#allocation5], %s45
      %s47 = sshll.u32 [#allocation6], 4
      %s48 = int_to_ptr.vmem [resolvable:$true] %s47
      %53 = dma.hbm_to_vmem [thread:$0]  %s4, 2048, %s48, [#allocation5], 128, 128, 8
    $region21: #{gru_cell_forward.1} parent=1 // pred_fallthru
      _
    // Predicated region
    $region22: #{gru_cell_forward.1} parent=1 // pred_check
      _
    $region23: #{gru_cell_forward.1} parent=1 // pred_check_branch
      %55 = sbr.rel (0) target = $region25
    $region24: #{gru_cell_forward.1} parent=1 // pred_region
      _
    $region25: #{gru_cell_forward.1} parent=1 // pred_fallthru
      _
    // Predicated region
    $region26: #{gru_cell_forward.1} parent=1 // pred_check
      _
    $region27: #{gru_cell_forward.1} parent=1 // pred_check_branch
      %57 = sbr.rel (0) target = $region29
    $region28: #{gru_cell_forward.1} parent=1 // pred_region
      _
    $region29: #{gru_cell_forward.1} parent=1 // pred_fallthru
      _
    // Predicated region
    $region30: #{gru_cell_forward.1} parent=1 // pred_check
      _
    $region31: #{gru_cell_forward.1} parent=1 // pred_check_branch
      %59 = sbr.rel (0) target = $region33
    $region32: #{gru_cell_forward.1} parent=1 // pred_region
      %60 = dma.done [#allocation3], 6144
    $region33: #{gru_cell_forward.1} parent=1 // pred_fallthru
      _
    // Predicated region
    $region34: #{gru_cell_forward.1} parent=1 // pred_check
      _
    $region35: #{gru_cell_forward.1} parent=1 // pred_check_branch
      %62 = sbr.rel (0) target = $region37
    $region36: #{gru_cell_forward.1} parent=1 // pred_region
      %63 = dma.done [#allocation5], 4096
    $region37: #{gru_cell_forward.1} parent=1 // pred_fallthru
      _
    // Predicated region
    $region38: #{gru_cell_forward.1} parent=1 // pred_check
      _
    $region39: #{gru_cell_forward.1} parent=1 // pred_check_branch
      %65 = sbr.rel (0) target = $region41
    $region40: #{gru_cell_forward.1} parent=1 // pred_region
      %66 = dma.done [#allocation5], 2048
    $region41: #{gru_cell_forward.1} parent=1 // pred_fallthru
      _
    %v67 = vld [vmem:[%s1] sm:$0xff]
    %v68 = vld [vmem:[%s0] sm:$0xff]
    %v69 = vld [vmem:[#allocation2] sm:$0xff]
    %v70 = vld [vmem:[#allocation2 + $0x8] sm:$0xff]
    %v71 = vld [vmem:[#allocation2 + $0x10] sm:$0xff]
    %v72 = vld [vmem:[#allocation2 + $0x18] sm:$0xff]
    %v73 = vld [vmem:[#allocation2 + $0x20] sm:$0xff]
    %v74 = vld [vmem:[#allocation2 + $0x28] sm:$0xff]
    %v75 = vld [vmem:[#allocation2 + $0x30] sm:$0xff]
    %v76 = vld [vmem:[#allocation2 + $0x38] sm:$0xff]
    %v77 = vld [vmem:[#allocation2 + $0x40] sm:$0xff]
    %v78 = vld [vmem:[#allocation2 + $0x48] sm:$0xff]
    %v79 = vld [vmem:[#allocation2 + $0x50] sm:$0xff]
    %v80 = vld [vmem:[#allocation2 + $0x58] sm:$0xff]
    %v81 = vld [vmem:[#allocation2 + $0x60] sm:$0xff]
    %v82 = vld [vmem:[#allocation2 + $0x68] sm:$0xff]
    %v83 = vld [vmem:[#allocation2 + $0x70] sm:$0xff]
    %v84 = vld [vmem:[#allocation2 + $0x78] sm:$0xff]
    %v85 = vld [vmem:[#allocation2 + $0x80] sm:$0xff]
    %v86 = vld [vmem:[#allocation2 + $0x88] sm:$0xff]
    %v87 = vld [vmem:[#allocation2 + $0x90] sm:$0xff]
    %v88 = vld [vmem:[#allocation2 + $0x98] sm:$0xff]
    %v89 = vld [vmem:[#allocation2 + $0xa0] sm:$0xff]
    %v90 = vld [vmem:[#allocation2 + $0xa8] sm:$0xff]
    %v91 = vld [vmem:[#allocation2 + $0xb0] sm:$0xff]
    %v92 = vld [vmem:[#allocation2 + $0xb8] sm:$0xff]
    %v93 = vld [vmem:[#allocation2 + $0xc0] sm:$0xff]
    %v94 = vld [vmem:[#allocation2 + $0xc8] sm:$0xff]
    %v95 = vld [vmem:[#allocation2 + $0xd0] sm:$0xff]
    %v96 = vld [vmem:[#allocation2 + $0xd8] sm:$0xff]
    %v97 = vld [vmem:[#allocation2 + $0xe0] sm:$0xff]
    %v98 = vld [vmem:[#allocation2 + $0xe8] sm:$0xff]
    %v99 = vld [vmem:[#allocation2 + $0xf0] sm:$0xff]
    %v100 = vld [vmem:[#allocation2 + $0xf8] sm:$0xff]
    %v101 = vld [vmem:[#allocation2 + $0x100] sm:$0xff]
    %v102 = vld [vmem:[#allocation2 + $0x108] sm:$0xff]
    %v103 = vld [vmem:[#allocation2 + $0x110] sm:$0xff]
    %v104 = vld [vmem:[#allocation2 + $0x118] sm:$0xff]
    %v105 = vld [vmem:[#allocation2 + $0x120] sm:$0xff]
    %v106 = vld [vmem:[#allocation2 + $0x128] sm:$0xff]
    %v107 = vld [vmem:[#allocation2 + $0x130] sm:$0xff]
    %v108 = vld [vmem:[#allocation2 + $0x138] sm:$0xff]
    %v109 = vld [vmem:[#allocation2 + $0x140] sm:$0xff]
    %v110 = vld [vmem:[#allocation2 + $0x148] sm:$0xff]
    %v111 = vld [vmem:[#allocation2 + $0x150] sm:$0xff]
    %v112 = vld [vmem:[#allocation2 + $0x158] sm:$0xff]
    %v113 = vld [vmem:[#allocation2 + $0x160] sm:$0xff]
    %v114 = vld [vmem:[#allocation2 + $0x168] sm:$0xff]
    %v115 = vld [vmem:[#allocation2 + $0x170] sm:$0xff]
    %v116 = vld [vmem:[#allocation2 + $0x178] sm:$0xff]
    %v117 = vld [vmem:[%s5] sm:$0x7]
    %v119 = vlaneseq
    %v120 = vshrl.u32 %v119, 7
    %v121 = vsub.s32 0, %v120
    %v122 = vrot.slane %v117, %v121
    %v123 = vlaneseq
    %v124 = vshrl.u32 %v123, 7
    %v125 = vsub.s32 1, %v124
    %v126 = vrot.slane %v117, %v125
    %v127 = vlaneseq
    %v128 = vshrl.u32 %v127, 7
    %v129 = vsub.s32 2, %v128
    %v130 = vrot.slane %v117, %v129
    %134 = vmatprep.subr.mxu0 %v115
    %135 = vmatpush1.msra.mxu0 %v114
    %136 = vmatprep.subr.mxu0 %v112
    %137 = vmatpush1.msra.mxu0 %v111
    %138 = vmatprep.subr.mxu0 %v109
    %139 = vmatpush1.msra.mxu0 %v108
    %140 = vmatprep.subr.mxu0 %v106
    %141 = vmatpush1.msra.mxu0 %v105
    %142 = vmatprep.subr.mxu0 %v103
    %143 = vmatpush1.msra.mxu0 %v102
    %144 = vmatprep.subr.mxu0 %v100
    %145 = vmatpush1.msra.mxu0 %v99
    %146 = vmatprep.subr.mxu0 %v97
    %147 = vmatpush1.msra.mxu0 %v96
    %148 = vmatprep.subr.mxu0 %v94
    %149 = vmatpush1.msra.mxu0 %v93
    %150 = vmatprep.subr.mxu0 %v91
    %151 = vmatpush1.msra.mxu0 %v90
    %152 = vmatprep.subr.mxu0 %v88
    %153 = vmatpush1.msra.mxu0 %v87
    %154 = vmatprep.subr.mxu0 %v85
    %155 = vmatpush1.msra.mxu0 %v84
    %156 = vmatprep.subr.mxu0 %v82
    %157 = vmatpush1.msra.mxu0 %v81
    %158 = vmatprep.subr.mxu0 %v79
    %159 = vmatpush1.msra.mxu0 %v78
    %160 = vmatprep.subr.mxu0 %v76
    %161 = vmatpush1.msra.mxu0 %v75
    %162 = vmatprep.subr.mxu0 %v73
    %163 = vmatpush1.msra.mxu0 %v72
    %164 = vmatprep.subr.mxu0 %v70
    %165 = vmatpush1.msra.mxu0 %v69
    %166 = vmatprep.subr.mxu0 0.0
    %167 = vmatpush2.msra.mxu0 0.0
    %168 = vmatprep.subr.mxu0 0.0
    %169 = vmatpush2.msra.mxu0 0.0
    %170 = vmatprep.subr.mxu0 0.0
    %171 = vmatpush2.msra.mxu0 0.0
    %172 = vmatprep.subr.mxu0 0.0
    %173 = vmatpush2.msra.mxu0 0.0
    %174 = vmatprep.subr.mxu0 0.0
    %175 = vmatpush2.msra.mxu0 0.0
    %176 = vmatprep.subr.mxu0 0.0
    %177 = vmatpush2.msra.mxu0 0.0
    %178 = vmatprep.subr.mxu0 0.0
    %179 = vmatpush2.msra.mxu0 0.0
    %180 = vmatprep.subr.mxu0 0.0
    %181 = vmatpush2.msra.mxu0 0.0
    %182 = vmatprep.subr.mxu0 0.0
    %183 = vmatpush2.msra.mxu0 0.0
    %184 = vmatprep.subr.mxu0 0.0
    %185 = vmatpush2.msra.mxu0 0.0
    %186 = vmatprep.subr.mxu0 0.0
    %187 = vmatpush2.msra.mxu0 0.0
    %188 = vmatprep.subr.mxu0 0.0
    %189 = vmatpush2.msra.mxu0 0.0
    %190 = vmatprep.subr.mxu0 0.0
    %191 = vmatpush2.msra.mxu0 0.0
    %192 = vmatprep.subr.mxu0 0.0
    %193 = vmatpush2.msra.mxu0 0.0
    %194 = vmatprep.subr.mxu0 0.0
    %195 = vmatpush2.msra.mxu0 0.0
    %196 = vmatprep.subr.mxu0 0.0
    %197 = vmatpush2.msra.mxu0 0.0
    %198 = vmatprep.mubr.f32.mxu0 0.0
    %199 = vmatmul.mubr.f32.gmra.mxu0 %v68
    %v200 = vpop.f32.mrf.mxu0
    %v201 = vadd.f32 %v122, %v200
    %v202 = vpop.f32.mrf.mxu0
    %v203 = vadd.f32 %v126, %v202
    %204 = vdwg.mxu0
    %205 = vmatprep.subr.mxu0 0.0
    %206 = vmatpush1.msra.mxu0 %v116
    %207 = vmatprep.subr.mxu0 0.0
    %208 = vmatpush1.msra.mxu0 %v113
    %209 = vmatprep.subr.mxu0 0.0
    %210 = vmatpush1.msra.mxu0 %v110
    %211 = vmatprep.subr.mxu0 0.0
    %212 = vmatpush1.msra.mxu0 %v107
    %213 = vmatprep.subr.mxu0 0.0
    %214 = vmatpush1.msra.mxu0 %v104
    %215 = vmatprep.subr.mxu0 0.0
    %216 = vmatpush1.msra.mxu0 %v101
    %217 = vmatprep.subr.mxu0 0.0
    %218 = vmatpush1.msra.mxu0 %v98
    %219 = vmatprep.subr.mxu0 0.0
    %220 = vmatpush1.msra.mxu0 %v95
    %221 = vmatprep.subr.mxu0 0.0
    %222 = vmatpush1.msra.mxu0 %v92
    %223 = vmatprep.subr.mxu0 0.0
    %224 = vmatpush1.msra.mxu0 %v89
    %225 = vmatprep.subr.mxu0 0.0
    %226 = vmatpush1.msra.mxu0 %v86
    %227 = vmatprep.subr.mxu0 0.0
    %228 = vmatpush1.msra.mxu0 %v83
    %229 = vmatprep.subr.mxu0 0.0
    %230 = vmatpush1.msra.mxu0 %v80
    %231 = vmatprep.subr.mxu0 0.0
    %232 = vmatpush1.msra.mxu0 %v77
    %233 = vmatprep.subr.mxu0 0.0
    %234 = vmatpush1.msra.mxu0 %v74
    %235 = vmatprep.subr.mxu0 0.0
    %236 = vmatpush1.msra.mxu0 %v71
    %237 = vmatprep.subr.mxu0 0.0
    %238 = vmatpush2.msra.mxu0 0.0
    %239 = vmatprep.subr.mxu0 0.0
    %240 = vmatpush2.msra.mxu0 0.0
    %241 = vmatprep.subr.mxu0 0.0
    %242 = vmatpush2.msra.mxu0 0.0
    %243 = vmatprep.subr.mxu0 0.0
    %244 = vmatpush2.msra.mxu0 0.0
    %245 = vmatprep.subr.mxu0 0.0
    %246 = vmatpush2.msra.mxu0 0.0
    %247 = vmatprep.subr.mxu0 0.0
    %248 = vmatpush2.msra.mxu0 0.0
    %249 = vmatprep.subr.mxu0 0.0
    %250 = vmatpush2.msra.mxu0 0.0
    %251 = vmatprep.subr.mxu0 0.0
    %252 = vmatpush2.msra.mxu0 0.0
    %253 = vmatprep.subr.mxu0 0.0
    %254 = vmatpush2.msra.mxu0 0.0
    %255 = vmatprep.subr.mxu0 0.0
    %256 = vmatpush2.msra.mxu0 0.0
    %257 = vmatprep.subr.mxu0 0.0
    %258 = vmatpush2.msra.mxu0 0.0
    %259 = vmatprep.subr.mxu0 0.0
    %260 = vmatpush2.msra.mxu0 0.0
    %261 = vmatprep.subr.mxu0 0.0
    %262 = vmatpush2.msra.mxu0 0.0
    %263 = vmatprep.subr.mxu0 0.0
    %264 = vmatpush2.msra.mxu0 0.0
    %265 = vmatprep.subr.mxu0 0.0
    %266 = vmatpush2.msra.mxu0 0.0
    %267 = vmatprep.subr.mxu0 0.0
    %268 = vmatpush2.msra.mxu0 0.0
    %269 = vmatprep.mubr.f32.mxu0 0.0
    %270 = vmatmul.mubr.f32.gmra.mxu0 %v68
    %v271 = vpop.f32.mrf.mxu0
    %v272 = vadd.f32 %v130, %v271
    %v273 = vpop.f32.mrf.mxu0
    %274 = vdwg.mxu0
    %v275 = vld [vmem:[#allocation4] sm:$0xff]
    %v276 = vld [vmem:[#allocation4 + $0x8] sm:$0xff]
    %v277 = vld [vmem:[#allocation4 + $0x10] sm:$0xff]
    %v278 = vld [vmem:[#allocation4 + $0x18] sm:$0xff]
    %v279 = vld [vmem:[#allocation4 + $0x20] sm:$0xff]
    %v280 = vld [vmem:[#allocation4 + $0x28] sm:$0xff]
    %v281 = vld [vmem:[#allocation4 + $0x30] sm:$0xff]
    %v282 = vld [vmem:[#allocation4 + $0x38] sm:$0xff]
    %v283 = vld [vmem:[#allocation4 + $0x40] sm:$0xff]
    %v284 = vld [vmem:[#allocation4 + $0x48] sm:$0xff]
    %v285 = vld [vmem:[#allocation4 + $0x50] sm:$0xff]
    %v286 = vld [vmem:[#allocation4 + $0x58] sm:$0xff]
    %v287 = vld [vmem:[#allocation4 + $0x60] sm:$0xff]
    %v288 = vld [vmem:[#allocation4 + $0x68] sm:$0xff]
    %v289 = vld [vmem:[#allocation4 + $0x70] sm:$0xff]
    %v290 = vld [vmem:[#allocation4 + $0x78] sm:$0xff]
    %v291 = vld [vmem:[#allocation4 + $0x80] sm:$0xff]
    %v292 = vld [vmem:[#allocation4 + $0x88] sm:$0xff]
    %v293 = vld [vmem:[#allocation4 + $0x90] sm:$0xff]
    %v294 = vld [vmem:[#allocation4 + $0x98] sm:$0xff]
    %v295 = vld [vmem:[#allocation4 + $0xa0] sm:$0xff]
    %v296 = vld [vmem:[#allocation4 + $0xa8] sm:$0xff]
    %v297 = vld [vmem:[#allocation4 + $0xb0] sm:$0xff]
    %v298 = vld [vmem:[#allocation4 + $0xb8] sm:$0xff]
    %v299 = vld [vmem:[#allocation4 + $0xc0] sm:$0xff]
    %v300 = vld [vmem:[#allocation4 + $0xc8] sm:$0xff]
    %v301 = vld [vmem:[#allocation4 + $0xd0] sm:$0xff]
    %v302 = vld [vmem:[#allocation4 + $0xd8] sm:$0xff]
    %v303 = vld [vmem:[#allocation4 + $0xe0] sm:$0xff]
    %v304 = vld [vmem:[#allocation4 + $0xe8] sm:$0xff]
    %v305 = vld [vmem:[#allocation4 + $0xf0] sm:$0xff]
    %v306 = vld [vmem:[#allocation4 + $0xf8] sm:$0xff]
    %307 = vmatprep.subr.mxu0 %v306
    %308 = vmatpush1.msra.mxu0 %v305
    %309 = vmatprep.subr.mxu0 %v304
    %310 = vmatpush1.msra.mxu0 %v303
    %311 = vmatprep.subr.mxu0 %v302
    %312 = vmatpush1.msra.mxu0 %v301
    %313 = vmatprep.subr.mxu0 %v300
    %314 = vmatpush1.msra.mxu0 %v299
    %315 = vmatprep.subr.mxu0 %v298
    %316 = vmatpush1.msra.mxu0 %v297
    %317 = vmatprep.subr.mxu0 %v296
    %318 = vmatpush1.msra.mxu0 %v295
    %319 = vmatprep.subr.mxu0 %v294
    %320 = vmatpush1.msra.mxu0 %v293
    %321 = vmatprep.subr.mxu0 %v292
    %322 = vmatpush1.msra.mxu0 %v291
    %323 = vmatprep.subr.mxu0 %v290
    %324 = vmatpush1.msra.mxu0 %v289
    %325 = vmatprep.subr.mxu0 %v288
    %326 = vmatpush1.msra.mxu0 %v287
    %327 = vmatprep.subr.mxu0 %v286
    %328 = vmatpush1.msra.mxu0 %v285
    %329 = vmatprep.subr.mxu0 %v284
    %330 = vmatpush1.msra.mxu0 %v283
    %331 = vmatprep.subr.mxu0 %v282
    %332 = vmatpush1.msra.mxu0 %v281
    %333 = vmatprep.subr.mxu0 %v280
    %334 = vmatpush1.msra.mxu0 %v279
    %335 = vmatprep.subr.mxu0 %v278
    %336 = vmatpush1.msra.mxu0 %v277
    %337 = vmatprep.subr.mxu0 %v276
    %338 = vmatpush1.msra.mxu0 %v275
    %339 = vmatprep.subr.mxu0 0.0
    %340 = vmatpush2.msra.mxu0 0.0
    %341 = vmatprep.subr.mxu0 0.0
    %342 = vmatpush2.msra.mxu0 0.0
    %343 = vmatprep.subr.mxu0 0.0
    %344 = vmatpush2.msra.mxu0 0.0
    %345 = vmatprep.subr.mxu0 0.0
    %346 = vmatpush2.msra.mxu0 0.0
    %347 = vmatprep.subr.mxu0 0.0
    %348 = vmatpush2.msra.mxu0 0.0
    %349 = vmatprep.subr.mxu0 0.0
    %350 = vmatpush2.msra.mxu0 0.0
    %351 = vmatprep.subr.mxu0 0.0
    %352 = vmatpush2.msra.mxu0 0.0
    %353 = vmatprep.subr.mxu0 0.0
    %354 = vmatpush2.msra.mxu0 0.0
    %355 = vmatprep.subr.mxu0 0.0
    %356 = vmatpush2.msra.mxu0 0.0
    %357 = vmatprep.subr.mxu0 0.0
    %358 = vmatpush2.msra.mxu0 0.0
    %359 = vmatprep.subr.mxu0 0.0
    %360 = vmatpush2.msra.mxu0 0.0
    %361 = vmatprep.subr.mxu0 0.0
    %362 = vmatpush2.msra.mxu0 0.0
    %363 = vmatprep.subr.mxu0 0.0
    %364 = vmatpush2.msra.mxu0 0.0
    %365 = vmatprep.subr.mxu0 0.0
    %366 = vmatpush2.msra.mxu0 0.0
    %367 = vmatprep.subr.mxu0 0.0
    %368 = vmatpush2.msra.mxu0 0.0
    %369 = vmatprep.subr.mxu0 0.0
    %370 = vmatpush2.msra.mxu0 0.0
    %371 = vmatprep.mubr.f32.mxu0 0.0
    %372 = vmatmul.mubr.f32.gmra.mxu0 %v67
    %v373 = vpop.f32.mrf.mxu0
    %v374 = vadd.f32 0.0, %v373
    %v375 = vpop.f32.mrf.mxu0
    %v376 = vadd.f32 0.0, %v375
    %377 = vdwg.mxu0
    %v378 = vld [vmem:[#allocation6] sm:$0xff]
    %v379 = vld [vmem:[#allocation6 + $0x8] sm:$0xff]
    %v380 = vld [vmem:[#allocation6 + $0x10] sm:$0xff]
    %v381 = vld [vmem:[#allocation6 + $0x18] sm:$0xff]
    %v382 = vld [vmem:[#allocation6 + $0x20] sm:$0xff]
    %v383 = vld [vmem:[#allocation6 + $0x28] sm:$0xff]
    %v384 = vld [vmem:[#allocation6 + $0x30] sm:$0xff]
    %v385 = vld [vmem:[#allocation6 + $0x38] sm:$0xff]
    %v386 = vld [vmem:[#allocation6 + $0x40] sm:$0xff]
    %v387 = vld [vmem:[#allocation6 + $0x48] sm:$0xff]
    %v388 = vld [vmem:[#allocation6 + $0x50] sm:$0xff]
    %v389 = vld [vmem:[#allocation6 + $0x58] sm:$0xff]
    %v390 = vld [vmem:[#allocation6 + $0x60] sm:$0xff]
    %v391 = vld [vmem:[#allocation6 + $0x68] sm:$0xff]
    %v392 = vld [vmem:[#allocation6 + $0x70] sm:$0xff]
    %v393 = vld [vmem:[#allocation6 + $0x78] sm:$0xff]
    %v394 = vld [vmem:[%s6] sm:$0x1]
    %v396 = vlaneseq
    %v397 = vshrl.u32 %v396, 7
    %v398 = vsub.s32 0, %v397
    %v399 = vrot.slane %v394, %v398
    %401 = vmatprep.subr.mxu0 0.0
    %402 = vmatpush1.msra.mxu0 %v393
    %403 = vmatprep.subr.mxu0 0.0
    %404 = vmatpush1.msra.mxu0 %v392
    %405 = vmatprep.subr.mxu0 0.0
    %406 = vmatpush1.msra.mxu0 %v391
    %407 = vmatprep.subr.mxu0 0.0
    %408 = vmatpush1.msra.mxu0 %v390
    %409 = vmatprep.subr.mxu0 0.0
    %410 = vmatpush1.msra.mxu0 %v389
    %411 = vmatprep.subr.mxu0 0.0
    %412 = vmatpush1.msra.mxu0 %v388
    %413 = vmatprep.subr.mxu0 0.0
    %414 = vmatpush1.msra.mxu0 %v387
    %415 = vmatprep.subr.mxu0 0.0
    %416 = vmatpush1.msra.mxu0 %v386
    %417 = vmatprep.subr.mxu0 0.0
    %418 = vmatpush1.msra.mxu0 %v385
    %419 = vmatprep.subr.mxu0 0.0
    %420 = vmatpush1.msra.mxu0 %v384
    %421 = vmatprep.subr.mxu0 0.0
    %422 = vmatpush1.msra.mxu0 %v383
    %423 = vmatprep.subr.mxu0 0.0
    %424 = vmatpush1.msra.mxu0 %v382
    %425 = vmatprep.subr.mxu0 0.0
    %426 = vmatpush1.msra.mxu0 %v381
    %427 = vmatprep.subr.mxu0 0.0
    %428 = vmatpush1.msra.mxu0 %v380
    %429 = vmatprep.subr.mxu0 0.0
    %430 = vmatpush1.msra.mxu0 %v379
    %431 = vmatprep.subr.mxu0 0.0
    %432 = vmatpush1.msra.mxu0 %v378
    %433 = vmatprep.subr.mxu0 0.0
    %434 = vmatpush2.msra.mxu0 0.0
    %435 = vmatprep.subr.mxu0 0.0
    %436 = vmatpush2.msra.mxu0 0.0
    %437 = vmatprep.subr.mxu0 0.0
    %438 = vmatpush2.msra.mxu0 0.0
    %439 = vmatprep.subr.mxu0 0.0
    %440 = vmatpush2.msra.mxu0 0.0
    %441 = vmatprep.subr.mxu0 0.0
    %442 = vmatpush2.msra.mxu0 0.0
    %443 = vmatprep.subr.mxu0 0.0
    %444 = vmatpush2.msra.mxu0 0.0
    %445 = vmatprep.subr.mxu0 0.0
    %446 = vmatpush2.msra.mxu0 0.0
    %447 = vmatprep.subr.mxu0 0.0
    %448 = vmatpush2.msra.mxu0 0.0
    %449 = vmatprep.subr.mxu0 0.0
    %450 = vmatpush2.msra.mxu0 0.0
    %451 = vmatprep.subr.mxu0 0.0
    %452 = vmatpush2.msra.mxu0 0.0
    %453 = vmatprep.subr.mxu0 0.0
    %454 = vmatpush2.msra.mxu0 0.0
    %455 = vmatprep.subr.mxu0 0.0
    %456 = vmatpush2.msra.mxu0 0.0
    %457 = vmatprep.subr.mxu0 0.0
    %458 = vmatpush2.msra.mxu0 0.0
    %459 = vmatprep.subr.mxu0 0.0
    %460 = vmatpush2.msra.mxu0 0.0
    %461 = vmatprep.subr.mxu0 0.0
    %462 = vmatpush2.msra.mxu0 0.0
    %463 = vmatprep.subr.mxu0 0.0
    %464 = vmatpush2.msra.mxu0 0.0
    %465 = vmatprep.mubr.f32.mxu0 0.0
    %466 = vmatmul.mubr.f32.gmra.mxu0 %v67
    %v467 = vpop.f32.mrf.mxu0
    %v468 = vadd.f32 %v399, %v467
    %v469 = vpop.f32.mrf.mxu0
    %470 = vdwg.mxu0
    %v471 = vadd.f32 %v201, %v374
    %v472 = vxor.u32 %v471, 2147483648
    %v473 = vmul.f32 %v472, 1.442695
    %v474 = vpow.pop %v473
    %v475 = vadd.f32 %v474, 1.0
    %v476 = vrcp.pop %v475
    %v477 = vmul.f32 1.0, %v476
    %v478 = vadd.f32 %v203, %v376
    %v479 = vxor.u32 %v478, 2147483648
    %v480 = vmul.f32 %v479, 1.442695
    %v481 = vpow.pop %v480
    %v482 = vadd.f32 %v481, 1.0
    %v483 = vrcp.pop %v482
    %v484 = vmul.f32 1.0, %v483
    %v485 = vmul.f32 %v477, %v468
    %v486 = vadd.f32 %v272, %v485
    %v487 = vtanh.pop %v486
    %v488 = vsub.f32 %v67, %v487
    %v489 = vmul.f32 %v484, %v488
    %v490 = vadd.f32 %v487, %v489
    %491 = vst [vmem:[%s7] sm:$0xff] %v490
    // Predicated region
    $region42: #{gru_cell_forward.1} parent=1 // pred_check
      _
    $region43: #{gru_cell_forward.1} parent=1 // pred_check_branch
      %493 = sbr.rel (0) target = $region45
    $region44: #{gru_cell_forward.1} parent=1 // pred_region
      _
    $region45: #{gru_cell_forward.1} parent=1 // pred_fallthru
      _
    // Predicated region
    $region46: #{gru_cell_forward.1} parent=1 // pred_check
      _
    $region47: #{gru_cell_forward.1} parent=1 // pred_check_branch
      %495 = sbr.rel (0) target = $region49
    $region48: #{gru_cell_forward.1} parent=1 // pred_region
      _
    $region49: #{gru_cell_forward.1} parent=1 // pred_fallthru
      _
    %496 = vsyncpa [#allocation3], 1
    %497 = vsyncpa [#allocation5], 1

</llo_original>
